<compile_context>
chip_gen: v6e
topology: v6e:2x2x1
jax: 0.10.0
libtpu: 0.0.40
codegen_flags: <defaults>
</compile_context>

<pallas_src>
import jax
import jax.numpy as jnp
import numpy as np
from jax.experimental import pallas as pl
from jax.experimental.pallas import tpu as pltpu


def _timestep_embed_kernel(ts_ref,                 # SMEM, [B] int32 (scalar prefetch)
                           pe_ref,                 # VMEM, [max_len, 1, D]
                           w1_ref, b1_ref,         # VMEM, [D, D], [1, D]
                           w2_ref, b2_ref,         # VMEM, [D, D], [1, D]
                           o_ref,                  # VMEM, [1, B, D]
                           x_buf):                 # VMEM scratch, [B, D]
    B = x_buf.shape[0]

    # Fused gather: pe rows selected by the SMEM-prefetched timesteps.
    # Dynamic index on the (untiled) leading dim of the VMEM pe table.
    for b in range(B):
        x_buf[pl.ds(b, 1), :] = pe_ref[ts_ref[b]]   # [1, D] row

    x = x_buf[...]                                  # [B, D] f32

    # Linear 1 (MXU, f32 accumulate) + bias
    h = jnp.dot(x, w1_ref[...], preferred_element_type=jnp.float32) + b1_ref[...]

    # SiLU: h * sigmoid(h) — stable sigmoid, exp on the EUP slot.
    h = h * jax.nn.sigmoid(h)

    # Linear 2 (MXU) + bias
    y = jnp.dot(h, w2_ref[...], preferred_element_type=jnp.float32) + b2_ref[...]

    # Emit the permuted [1, B, D] layout directly.
    o_ref[0] = y.astype(o_ref.dtype)


def time_embed(timesteps, pe, w1, b1, w2, b2):
    """timesteps: [B] int -> [1, B, D] f32, fully fused in one Pallas kernel."""
    max_len, _, D = pe.shape
    B = timesteps.shape[0]
    return pl.pallas_call(
        _timestep_embed_kernel,
        out_shape=jax.ShapeDtypeStruct((1, B, D), jnp.float32),
        grid_spec=pltpu.PrefetchScalarGridSpec(
            num_scalar_prefetch=1,          # timesteps -> SMEM, fed to index_maps/kernel
            grid=(1,),
            in_specs=[
                pl.BlockSpec((max_len, 1, D), lambda i, ts: (0, 0, 0)),  # full pe table
                pl.BlockSpec((D, D), lambda i, ts: (0, 0)),              # w1 (resident)
                pl.BlockSpec((1, D), lambda i, ts: (0, 0)),              # b1
                pl.BlockSpec((D, D), lambda i, ts: (0, 0)),              # w2 (resident)
                pl.BlockSpec((1, D), lambda i, ts: (0, 0)),              # b2
            ],
            out_specs=pl.BlockSpec((1, B, D), lambda i, ts: (0, 0, 0)),
            scratch_shapes=[pltpu.VMEM((B, D), jnp.float32)],
        ),
        compiler_params=pltpu.CompilerParams(
            dimension_semantics=("arbitrary",)),
    )(timesteps.astype(jnp.int32), pe, w1, b1, w2, b2)


def make_sinusoidal_pe(max_len, d_model):
    """Standard PositionalEncoding table, shape [max_len, 1, d_model]."""
    position = np.arange(max_len, dtype=np.float32)[:, None]
    div_term = np.exp(np.arange(0, d_model, 2, dtype=np.float32)
                      * (-np.log(10000.0) / d_model))
    pe = np.zeros((max_len, d_model), dtype=np.float32)
    pe[:, 0::2] = np.sin(position * div_term)
    pe[:, 1::2] = np.cos(position * div_term)
    return jnp.asarray(pe[:, None, :])  # [max_len, 1, d_model]


class TimestepEmbedderPallas:
    def __init__(self, latent_dim, pe, key):
        self.latent_dim = latent_dim
        self.pe = pe  # [max_len, 1, latent_dim]
        k1, k2, k3, k4 = jax.random.split(key, 4)
        bound = 1.0 / np.sqrt(latent_dim)
        # nn.Linear default init: U(-1/sqrt(fan_in), 1/sqrt(fan_in)).
        # Weights stored transposed relative to torch (kernel does x @ W).
        self.w1 = jax.random.uniform(k1, (latent_dim, latent_dim),
                                     jnp.float32, -bound, bound)
        self.b1 = jax.random.uniform(k2, (1, latent_dim),
                                     jnp.float32, -bound, bound)
        self.w2 = jax.random.uniform(k3, (latent_dim, latent_dim),
                                     jnp.float32, -bound, bound)
        self.b2 = jax.random.uniform(k4, (1, latent_dim),
                                     jnp.float32, -bound, bound)

    def __call__(self, timesteps):
        # Gather + MLP + permute all inside one pallas_call -> [1, bs, d].
        return time_embed(timesteps, self.pe,
                          self.w1, self.b1, self.w2, self.b2)


def _reference(timesteps, pe, w1, b1, w2, b2):
    x = pe[timesteps]                    # [bs, 1, d]
    h = x @ w1 + b1
    h = h * jax.nn.sigmoid(h)
    y = h @ w2 + b2
    return jnp.transpose(y, (1, 0, 2))   # [1, bs, d]


if __name__ == "__main__":
    latent_dim = 32
    max_len = 64
    bs = 8

    key = jax.random.PRNGKey(0)
    k_params, k_ts = jax.random.split(key)

    pe = make_sinusoidal_pe(max_len, latent_dim)
    embedder = TimestepEmbedderPallas(latent_dim, pe, k_params)

    timesteps = jax.random.randint(k_ts, (bs,), 0, max_len)  # int timesteps

    out = embedder(timesteps)
    out = jax.block_until_ready(out)
    assert out.shape == (1, bs, latent_dim), out.shape

    # Correctness check against a pure-JAX reference of the same math.
    ref = _reference(timesteps, pe, embedder.w1, embedder.b1,
                     embedder.w2, embedder.b2)
    np.testing.assert_allclose(np.asarray(out), np.asarray(ref),
                               rtol=1e-5, atol=1e-5)

    print("KERNEL_OK")
</pallas_src>

<mosaic_0001>
module attributes {stable_mosaic.version = 11 : i64} {
  func.func @_timestep_embed_kernel(%arg0: i32, %arg1: memref<8xi32, #tpu.memory_space<smem>>, %arg2: memref<64x1x32xf32, #tpu.memory_space<vmem>>, %arg3: memref<32x32xf32, #tpu.memory_space<vmem>>, %arg4: memref<1x32xf32, #tpu.memory_space<vmem>>, %arg5: memref<32x32xf32, #tpu.memory_space<vmem>>, %arg6: memref<1x32xf32, #tpu.memory_space<vmem>>, %arg7: memref<1x8x32xf32, #tpu.memory_space<vmem>>, %arg8: memref<8x32xf32, #tpu.memory_space<vmem>>) attributes {dimension_semantics = [#tpu.dimension_semantics<arbitrary>], iteration_bounds = array<i64: 1>, scalar_prefetch = 1 : i64, scratch_operands = 1 : i64, tpu.core_type = #tpu.core_type<tc>, window_params = [{pipeline_mode = #tpu.pipeline_mode<synchronous>, transform_indices = @transform_0, window_bounds = array<i64: 64, 1, 32>}, {pipeline_mode = #tpu.pipeline_mode<synchronous>, transform_indices = @transform_1, window_bounds = array<i64: 32, 32>}, {pipeline_mode = #tpu.pipeline_mode<synchronous>, transform_indices = @transform_2, window_bounds = array<i64: 1, 32>}, {pipeline_mode = #tpu.pipeline_mode<synchronous>, transform_indices = @transform_3, window_bounds = array<i64: 32, 32>}, {pipeline_mode = #tpu.pipeline_mode<synchronous>, transform_indices = @transform_4, window_bounds = array<i64: 1, 32>}, {pipeline_mode = #tpu.pipeline_mode<synchronous>, transform_indices = @transform_5, window_bounds = array<i64: 1, 8, 32>}]} {
    %c0 = arith.constant 0 : index
    %0 = memref.load %arg1[%c0] : memref<8xi32, #tpu.memory_space<smem>>
    %1 = arith.index_cast %0 : i32 to index
    %c0_0 = arith.constant 0 : index
    %c0_1 = arith.constant 0 : index
    %2 = vector.load %arg2[%1, %c0_0, %c0_1] : memref<64x1x32xf32, #tpu.memory_space<vmem>>, vector<1x1x32xf32>
    %3 = vector.shape_cast %2 : vector<1x1x32xf32> to vector<1x32xf32>
    %c0_2 = arith.constant 0 : index
    %c0_3 = arith.constant 0 : index
    %4 = vector.load %arg8[%c0_2, %c0_3] : memref<8x32xf32, #tpu.memory_space<vmem>>, vector<1x32xf32>
    tpu.vector_store %arg8[%c0_2, %c0_3], %3 {strides = array<i32>} : memref<8x32xf32, #tpu.memory_space<vmem>>, vector<1x32xf32>,
    %c1 = arith.constant 1 : index
    %5 = memref.load %arg1[%c1] : memref<8xi32, #tpu.memory_space<smem>>
    %6 = arith.index_cast %5 : i32 to index
    %c0_4 = arith.constant 0 : index
    %c0_5 = arith.constant 0 : index
    %7 = vector.load %arg2[%6, %c0_4, %c0_5] : memref<64x1x32xf32, #tpu.memory_space<vmem>>, vector<1x1x32xf32>
    %8 = vector.shape_cast %7 : vector<1x1x32xf32> to vector<1x32xf32>
    %c1_6 = arith.constant 1 : index
    %c0_7 = arith.constant 0 : index
    %9 = vector.load %arg8[%c1_6, %c0_7] : memref<8x32xf32, #tpu.memory_space<vmem>>, vector<1x32xf32>
    tpu.vector_store %arg8[%c1_6, %c0_7], %8 {strides = array<i32>} : memref<8x32xf32, #tpu.memory_space<vmem>>, vector<1x32xf32>,
    %c2 = arith.constant 2 : index
    %10 = memref.load %arg1[%c2] : memref<8xi32, #tpu.memory_space<smem>>
    %11 = arith.index_cast %10 : i32 to index
    %c0_8 = arith.constant 0 : index
    %c0_9 = arith.constant 0 : index
    %12 = vector.load %arg2[%11, %c0_8, %c0_9] : memref<64x1x32xf32, #tpu.memory_space<vmem>>, vector<1x1x32xf32>
    %13 = vector.shape_cast %12 : vector<1x1x32xf32> to vector<1x32xf32>
    %c2_10 = arith.constant 2 : index
    %c0_11 = arith.constant 0 : index
    %14 = vector.load %arg8[%c2_10, %c0_11] : memref<8x32xf32, #tpu.memory_space<vmem>>, vector<1x32xf32>
    tpu.vector_store %arg8[%c2_10, %c0_11], %13 {strides = array<i32>} : memref<8x32xf32, #tpu.memory_space<vmem>>, vector<1x32xf32>,
    %c3 = arith.constant 3 : index
    %15 = memref.load %arg1[%c3] : memref<8xi32, #tpu.memory_space<smem>>
    %16 = arith.index_cast %15 : i32 to index
    %c0_12 = arith.constant 0 : index
    %c0_13 = arith.constant 0 : index
    %17 = vector.load %arg2[%16, %c0_12, %c0_13] : memref<64x1x32xf32, #tpu.memory_space<vmem>>, vector<1x1x32xf32>
    %18 = vector.shape_cast %17 : vector<1x1x32xf32> to vector<1x32xf32>
    %c3_14 = arith.constant 3 : index
    %c0_15 = arith.constant 0 : index
    %19 = vector.load %arg8[%c3_14, %c0_15] : memref<8x32xf32, #tpu.memory_space<vmem>>, vector<1x32xf32>
    tpu.vector_store %arg8[%c3_14, %c0_15], %18 {strides = array<i32>} : memref<8x32xf32, #tpu.memory_space<vmem>>, vector<1x32xf32>,
    %c4 = arith.constant 4 : index
    %20 = memref.load %arg1[%c4] : memref<8xi32, #tpu.memory_space<smem>>
    %21 = arith.index_cast %20 : i32 to index
    %c0_16 = arith.constant 0 : index
    %c0_17 = arith.constant 0 : index
    %22 = vector.load %arg2[%21, %c0_16, %c0_17] : memref<64x1x32xf32, #tpu.memory_space<vmem>>, vector<1x1x32xf32>
    %23 = vector.shape_cast %22 : vector<1x1x32xf32> to vector<1x32xf32>
    %c4_18 = arith.constant 4 : index
    %c0_19 = arith.constant 0 : index
    %24 = vector.load %arg8[%c4_18, %c0_19] : memref<8x32xf32, #tpu.memory_space<vmem>>, vector<1x32xf32>
    tpu.vector_store %arg8[%c4_18, %c0_19], %23 {strides = array<i32>} : memref<8x32xf32, #tpu.memory_space<vmem>>, vector<1x32xf32>,
    %c5 = arith.constant 5 : index
    %25 = memref.load %arg1[%c5] : memref<8xi32, #tpu.memory_space<smem>>
    %26 = arith.index_cast %25 : i32 to index
    %c0_20 = arith.constant 0 : index
    %c0_21 = arith.constant 0 : index
    %27 = vector.load %arg2[%26, %c0_20, %c0_21] : memref<64x1x32xf32, #tpu.memory_space<vmem>>, vector<1x1x32xf32>
    %28 = vector.shape_cast %27 : vector<1x1x32xf32> to vector<1x32xf32>
    %c5_22 = arith.constant 5 : index
    %c0_23 = arith.constant 0 : index
    %29 = vector.load %arg8[%c5_22, %c0_23] : memref<8x32xf32, #tpu.memory_space<vmem>>, vector<1x32xf32>
    tpu.vector_store %arg8[%c5_22, %c0_23], %28 {strides = array<i32>} : memref<8x32xf32, #tpu.memory_space<vmem>>, vector<1x32xf32>,
    %c6 = arith.constant 6 : index
    %30 = memref.load %arg1[%c6] : memref<8xi32, #tpu.memory_space<smem>>
    %31 = arith.index_cast %30 : i32 to index
    %c0_24 = arith.constant 0 : index
    %c0_25 = arith.constant 0 : index
    %32 = vector.load %arg2[%31, %c0_24, %c0_25] : memref<64x1x32xf32, #tpu.memory_space<vmem>>, vector<1x1x32xf32>
    %33 = vector.shape_cast %32 : vector<1x1x32xf32> to vector<1x32xf32>
    %c6_26 = arith.constant 6 : index
    %c0_27 = arith.constant 0 : index
    %34 = vector.load %arg8[%c6_26, %c0_27] : memref<8x32xf32, #tpu.memory_space<vmem>>, vector<1x32xf32>
    tpu.vector_store %arg8[%c6_26, %c0_27], %33 {strides = array<i32>} : memref<8x32xf32, #tpu.memory_space<vmem>>, vector<1x32xf32>,
    %c7 = arith.constant 7 : index
    %35 = memref.load %arg1[%c7] : memref<8xi32, #tpu.memory_space<smem>>
    %36 = arith.index_cast %35 : i32 to index
    %c0_28 = arith.constant 0 : index
    %c0_29 = arith.constant 0 : index
    %37 = vector.load %arg2[%36, %c0_28, %c0_29] : memref<64x1x32xf32, #tpu.memory_space<vmem>>, vector<1x1x32xf32>
    %38 = vector.shape_cast %37 : vector<1x1x32xf32> to vector<1x32xf32>
    %c7_30 = arith.constant 7 : index
    %c0_31 = arith.constant 0 : index
    %39 = vector.load %arg8[%c7_30, %c0_31] : memref<8x32xf32, #tpu.memory_space<vmem>>, vector<1x32xf32>
    tpu.vector_store %arg8[%c7_30, %c0_31], %38 {strides = array<i32>} : memref<8x32xf32, #tpu.memory_space<vmem>>, vector<1x32xf32>,
    %c0_32 = arith.constant 0 : index
    %c0_33 = arith.constant 0 : index
    %40 = vector.load %arg8[%c0_32, %c0_33] : memref<8x32xf32, #tpu.memory_space<vmem>>, vector<8x32xf32>
    %c0_34 = arith.constant 0 : index
    %c0_35 = arith.constant 0 : index
    %41 = vector.load %arg3[%c0_34, %c0_35] : memref<32x32xf32, #tpu.memory_space<vmem>>, vector<32x32xf32>
    %cst = arith.constant dense<0.000000e+00> : vector<8x32xf32>
    %42 = tpu.matmul %40, %41, %cst {dimension_numbers = #tpu.dot_dimension_numbers<[1], [0], [0], [1], [0, 0, 1, 1], [], []>} : vector<8x32xf32>, vector<32x32xf32>, vector<8x32xf32> -> vector<8x32xf32>
    %c0_36 = arith.constant 0 : index
    %c0_37 = arith.constant 0 : index
    %43 = vector.load %arg4[%c0_36, %c0_37] : memref<1x32xf32, #tpu.memory_space<vmem>>, vector<1x32xf32>
    %44 = vector.broadcast %43 : vector<1x32xf32> to vector<8x32xf32>
    %45 = arith.addf %42, %44 : vector<8x32xf32>
    %46 = arith.negf %45 : vector<8x32xf32>
    %47 = math.exp %46 : vector<8x32xf32>
    %cst_38 = arith.constant 1.000000e+00 : f32
    %48 = vector.broadcast %cst_38 : f32 to vector<8x32xf32>
    %49 = arith.addf %48, %47 : vector<8x32xf32>
    %50 = arith.divf %48, %49 : vector<8x32xf32>
    %51 = arith.mulf %45, %50 : vector<8x32xf32>
    %c0_39 = arith.constant 0 : index
    %c0_40 = arith.constant 0 : index
    %52 = vector.load %arg5[%c0_39, %c0_40] : memref<32x32xf32, #tpu.memory_space<vmem>>, vector<32x32xf32>
    %cst_41 = arith.constant dense<0.000000e+00> : vector<8x32xf32>
    %53 = tpu.matmul %51, %52, %cst_41 {dimension_numbers = #tpu.dot_dimension_numbers<[1], [0], [0], [1], [0, 0, 1, 1], [], []>} : vector<8x32xf32>, vector<32x32xf32>, vector<8x32xf32> -> vector<8x32xf32>
    %c0_42 = arith.constant 0 : index
    %c0_43 = arith.constant 0 : index
    %54 = vector.load %arg6[%c0_42, %c0_43] : memref<1x32xf32, #tpu.memory_space<vmem>>, vector<1x32xf32>
    %55 = vector.broadcast %54 : vector<1x32xf32> to vector<8x32xf32>
    %56 = arith.addf %53, %55 : vector<8x32xf32>
    %c0_44 = arith.constant 0 : index
    %c0_45 = arith.constant 0 : index
    %c0_46 = arith.constant 0 : index
    %57 = vector.load %arg7[%c0_44, %c0_45, %c0_46] : memref<1x8x32xf32, #tpu.memory_space<vmem>>, vector<1x8x32xf32>
    %58 = vector.shape_cast %57 : vector<1x8x32xf32> to vector<8x32xf32>
    %59 = vector.shape_cast %56 : vector<8x32xf32> to vector<1x8x32xf32>
    tpu.vector_store %arg7[%c0_44, %c0_45, %c0_46], %59 {strides = array<i32>} : memref<1x8x32xf32, #tpu.memory_space<vmem>>, vector<1x8x32xf32>,
    return
  }
  func.func @transform_0(%arg0: i32, %arg1: memref<8xi32, #tpu.memory_space<smem>>) -> (i32, i32, i32) {
    %c0_i32 = arith.constant 0 : i32
    %c0_i32_0 = arith.constant 0 : i32
    %c0_i32_1 = arith.constant 0 : i32
    %c0_i32_2 = arith.constant 0 : i32
    return %c0_i32, %c0_i32_0, %c0_i32_1 : i32, i32, i32
  }
  func.func @transform_1(%arg0: i32, %arg1: memref<8xi32, #tpu.memory_space<smem>>) -> (i32, i32) {
    %c0_i32 = arith.constant 0 : i32
    %c0_i32_0 = arith.constant 0 : i32
    %c0_i32_1 = arith.constant 0 : i32
    return %c0_i32, %c0_i32_0 : i32, i32
  }
  func.func @transform_2(%arg0: i32, %arg1: memref<8xi32, #tpu.memory_space<smem>>) -> (i32, i32) {
    %c0_i32 = arith.constant 0 : i32
    %c0_i32_0 = arith.constant 0 : i32
    %c0_i32_1 = arith.constant 0 : i32
    return %c0_i32, %c0_i32_0 : i32, i32
  }
  func.func @transform_3(%arg0: i32, %arg1: memref<8xi32, #tpu.memory_space<smem>>) -> (i32, i32) {
    %c0_i32 = arith.constant 0 : i32
    %c0_i32_0 = arith.constant 0 : i32
    %c0_i32_1 = arith.constant 0 : i32
    return %c0_i32, %c0_i32_0 : i32, i32
  }
  func.func @transform_4(%arg0: i32, %arg1: memref<8xi32, #tpu.memory_space<smem>>) -> (i32, i32) {
    %c0_i32 = arith.constant 0 : i32
    %c0_i32_0 = arith.constant 0 : i32
    %c0_i32_1 = arith.constant 0 : i32
    return %c0_i32, %c0_i32_0 : i32, i32
  }
  func.func @transform_5(%arg0: i32, %arg1: memref<8xi32, #tpu.memory_space<smem>>) -> (i32, i32, i32) {
    %c0_i32 = arith.constant 0 : i32
    %c0_i32_0 = arith.constant 0 : i32
    %c0_i32_1 = arith.constant 0 : i32
    %c0_i32_2 = arith.constant 0 : i32
    return %c0_i32, %c0_i32_0, %c0_i32_1 : i32, i32, i32
  }
}

</mosaic_0001>

<llo_original>
// kernel: tpu_custom_call.1
$region0: #{tpu_custom_call.1}
  #allocation0 [shape = 'u32[]', space=smem, size = 0x4, offset = 0x4, fixed_abs, tag = 'smem constant byte address 0x4 - core index']
  #allocation1 [shape = 'u32[144,128]{1,0:T(1,128)}', space=vmem, size = 0x12000, scoped, tag = 'internal scratch']
  #allocation2 [shape = 'f32[8,32]{1,0:T(8,128)}', space=vmem, size = 0x1000, scoped, tag = 'scratch operand']
  #allocation3 [shape = 's32[1]{0}', space=sflag, size = 0x4, scoped, tag = 'scoped memory for tpu_custom_call.1']
  #allocation4 [shape = 'u8[512]{0}', space=smem, size = 0x200, scoped, tag = 'prefetched SMEM operand 0']
  %s0 = inlined_call_operand.vmem [shape: s32[8], index: 0, kind: input, shape index: {}]
  %s1 = inlined_call_operand.vmem [shape: f32[64,1,32], index: 1, kind: input, shape index: {}]
  %s2 = inlined_call_operand.vmem [shape: f32[32,32], index: 2, kind: input, shape index: {}]
  %s3 = inlined_call_operand.vmem [shape: f32[1,32], index: 3, kind: input, shape index: {}]
  %s4 = inlined_call_operand.vmem [shape: f32[32,32], index: 4, kind: input, shape index: {}]
  %s5 = inlined_call_operand.vmem [shape: f32[1,32], index: 5, kind: input, shape index: {}]
  %s6 = inlined_call_operand.hbm [shape: f32[1,8,32], index: 6, kind: output, shape index: {}]
  %s7 = sld [smem:[#allocation0]]
  $region30: #{tpu_custom_call.1} parent=0
    _
  %s9 = ssub.s32 1, %s7
  %s10 = scalar_select 0, %s9, %s7
  %s11 = sshll.u32 %s0, 4
  %s12 = int_to_ptr.vmem [resolvable:$true] %s11
  %14 = dma.vmem_to_smem %s12, 16, [#allocation4], [#allocation3]
  %15 = dma.done [#allocation3], 16
  %16 = sfence
  $region1: #{tpu_custom_call.1} parent=0
    #allocation5 [shape = 'u8[4096]{0}', space=vmem, size = 0x1000, scoped, tag = 'output window, operand 0, single buffered']
    #allocation6 [shape = 's32[1]{0}', space=sflag, size = 0x4, scoped, tag = 'scoped memory for tpu_custom_call.1']
    %17 = vsyncpa [#allocation6], 0
    // Predicated region
    $region2: #{tpu_custom_call.1} parent=1 // pred_check
      _
    $region3: #{tpu_custom_call.1} parent=1 // pred_check_branch
      %19 = sbr.rel (0) target = $region5
    $region4: #{tpu_custom_call.1} parent=1 // pred_region
      _
    $region5: #{tpu_custom_call.1} parent=1 // pred_fallthru
      _
    // Predicated region
    $region6: #{tpu_custom_call.1} parent=1 // pred_check
      _
    $region7: #{tpu_custom_call.1} parent=1 // pred_check_branch
      %21 = sbr.rel (0) target = $region9
    $region8: #{tpu_custom_call.1} parent=1 // pred_region
      _
    $region9: #{tpu_custom_call.1} parent=1 // pred_fallthru
      _
    // Predicated region
    $region10: #{tpu_custom_call.1} parent=1 // pred_check
      _
    $region11: #{tpu_custom_call.1} parent=1 // pred_check_branch
      %23 = sbr.rel (0) target = $region13
    $region12: #{tpu_custom_call.1} parent=1 // pred_region
      _
    $region13: #{tpu_custom_call.1} parent=1 // pred_fallthru
      _
    // Predicated region
    $region14: #{tpu_custom_call.1} parent=1 // pred_check
      _
    $region15: #{tpu_custom_call.1} parent=1 // pred_check_branch
      %25 = sbr.rel (0) target = $region17
    $region16: #{tpu_custom_call.1} parent=1 // pred_region
      _
    $region17: #{tpu_custom_call.1} parent=1 // pred_fallthru
      _
    // Predicated region
    $region18: #{tpu_custom_call.1} parent=1 // pred_check
      _
    $region19: #{tpu_custom_call.1} parent=1 // pred_check_branch
      %27 = sbr.rel (0) target = $region21
    $region20: #{tpu_custom_call.1} parent=1 // pred_region
      _
    $region21: #{tpu_custom_call.1} parent=1 // pred_fallthru
      _
    %s28 = sld [smem:[#allocation4]]
    %s29 = scalar_lea.vmem %s1, %s28
    %v30 = vld [vmem:[%s29] sm:$0x1]
    %vm31 = vcmask 253952
    %32 = vst.msk [vmem:[#allocation2] sm:$0x1] %vm31, %v30
    %s33 = sld [smem:[#allocation4 + $0x1]]
    %s34 = scalar_lea.vmem %s1, %s33
    %v35 = vld [vmem:[%s34] sm:$0x1]
    %36 = vst.msk [vmem:[#allocation2 + $0x1] sm:$0x1] %vm31, %v35
    %s37 = sld [smem:[#allocation4 + $0x2]]
    %s38 = scalar_lea.vmem %s1, %s37
    %v39 = vld [vmem:[%s38] sm:$0x1]
    %40 = vst.msk [vmem:[#allocation2 + $0x2] sm:$0x1] %vm31, %v39
    %s41 = sld [smem:[#allocation4 + $0x3]]
    %s42 = scalar_lea.vmem %s1, %s41
    %v43 = vld [vmem:[%s42] sm:$0x1]
    %44 = vst.msk [vmem:[#allocation2 + $0x3] sm:$0x1] %vm31, %v43
    %s45 = sld [smem:[#allocation4 + $0x4]]
    %s46 = scalar_lea.vmem %s1, %s45
    %v47 = vld [vmem:[%s46] sm:$0x1]
    %48 = vst.msk [vmem:[#allocation2 + $0x4] sm:$0x1] %vm31, %v47
    %s49 = sld [smem:[#allocation4 + $0x5]]
    %s50 = scalar_lea.vmem %s1, %s49
    %v51 = vld [vmem:[%s50] sm:$0x1]
    %52 = vst.msk [vmem:[#allocation2 + $0x5] sm:$0x1] %vm31, %v51
    %s53 = sld [smem:[#allocation4 + $0x6]]
    %s54 = scalar_lea.vmem %s1, %s53
    %v55 = vld [vmem:[%s54] sm:$0x1]
    %56 = vst.msk [vmem:[#allocation2 + $0x6] sm:$0x1] %vm31, %v55
    %s57 = sld [smem:[#allocation4 + $0x7]]
    %s58 = scalar_lea.vmem %s1, %s57
    %v59 = vld [vmem:[%s58] sm:$0x1]
    %60 = vst.msk [vmem:[#allocation2 + $0x7] sm:$0x1] %vm31, %v59
    %v61 = vld [vmem:[#allocation2] sm:$0xff]
    %v62 = vld [vmem:[%s2] sm:$0xff]
    %v63 = vld [vmem:[%s2 + $0x8] sm:$0xff]
    %v64 = vld [vmem:[%s2 + $0x10] sm:$0xff]
    %v65 = vld [vmem:[%s2 + $0x18] sm:$0xff]
    %v66 = vld [vmem:[%s3] sm:$0x1]
    %v68 = vlaneseq
    %v69 = vshrl.u32 %v68, 7
    %v70 = vsub.s32 0, %v69
    %v71 = vrot.slane %v66, %v70
    %vm73 = vcmask 261120
    %v75 = vsel %vm73, %v61, 0
    %77 = vmatprep.subr.mxu0 0.0
    %78 = vmatpush1.msra.mxu0 0.0
    %79 = vmatprep.subr.mxu0 0.0
    %80 = vmatpush1.msra.mxu0 0.0
    %81 = vmatprep.subr.mxu0 0.0
    %82 = vmatpush1.msra.mxu0 0.0
    %83 = vmatprep.subr.mxu0 0.0
    %84 = vmatpush1.msra.mxu0 0.0
    %85 = vmatprep.subr.mxu0 0.0
    %86 = vmatpush1.msra.mxu0 0.0
    %87 = vmatprep.subr.mxu0 0.0
    %88 = vmatpush1.msra.mxu0 0.0
    %89 = vmatprep.subr.mxu0 0.0
    %90 = vmatpush1.msra.mxu0 0.0
    %91 = vmatprep.subr.mxu0 0.0
    %92 = vmatpush1.msra.mxu0 0.0
    %93 = vmatprep.subr.mxu0 0.0
    %94 = vmatpush1.msra.mxu0 0.0
    %95 = vmatprep.subr.mxu0 0.0
    %96 = vmatpush1.msra.mxu0 0.0
    %97 = vmatprep.subr.mxu0 0.0
    %98 = vmatpush1.msra.mxu0 0.0
    %99 = vmatprep.subr.mxu0 0.0
    %100 = vmatpush1.msra.mxu0 0.0
    %101 = vmatprep.subr.mxu0 0.0
    %102 = vmatpush1.msra.mxu0 %v65
    %103 = vmatprep.subr.mxu0 0.0
    %104 = vmatpush1.msra.mxu0 %v64
    %105 = vmatprep.subr.mxu0 0.0
    %106 = vmatpush1.msra.mxu0 %v63
    %107 = vmatprep.subr.mxu0 0.0
    %108 = vmatpush1.msra.mxu0 %v62
    %109 = vmatprep.subr.mxu0 0.0
    %110 = vmatpush2.msra.mxu0 0.0
    %111 = vmatprep.subr.mxu0 0.0
    %112 = vmatpush2.msra.mxu0 0.0
    %113 = vmatprep.subr.mxu0 0.0
    %114 = vmatpush2.msra.mxu0 0.0
    %115 = vmatprep.subr.mxu0 0.0
    %116 = vmatpush2.msra.mxu0 0.0
    %117 = vmatprep.subr.mxu0 0.0
    %118 = vmatpush2.msra.mxu0 0.0
    %119 = vmatprep.subr.mxu0 0.0
    %120 = vmatpush2.msra.mxu0 0.0
    %121 = vmatprep.subr.mxu0 0.0
    %122 = vmatpush2.msra.mxu0 0.0
    %123 = vmatprep.subr.mxu0 0.0
    %124 = vmatpush2.msra.mxu0 0.0
    %125 = vmatprep.subr.mxu0 0.0
    %126 = vmatpush2.msra.mxu0 0.0
    %127 = vmatprep.subr.mxu0 0.0
    %128 = vmatpush2.msra.mxu0 0.0
    %129 = vmatprep.subr.mxu0 0.0
    %130 = vmatpush2.msra.mxu0 0.0
    %131 = vmatprep.subr.mxu0 0.0
    %132 = vmatpush2.msra.mxu0 0.0
    %133 = vmatprep.subr.mxu0 0.0
    %134 = vmatpush2.msra.mxu0 0.0
    %135 = vmatprep.subr.mxu0 0.0
    %136 = vmatpush2.msra.mxu0 0.0
    %137 = vmatprep.subr.mxu0 0.0
    %138 = vmatpush2.msra.mxu0 0.0
    %139 = vmatprep.subr.mxu0 0.0
    %140 = vmatpush2.msra.mxu0 0.0
    %141 = vmatprep.mubr.f32.mxu0 0.0
    %142 = vmatmul.mubr.f32.gmra.mxu0 %v75
    %v143 = vpop.f32.mrf.mxu0
    %v144 = vadd.f32 %v71, %v143
    %v145 = vpop.f32.mrf.mxu0
    %146 = vdwg.mxu0
    %v147 = vxor.u32 %v144, 2147483648
    %v148 = vmul.f32 %v147, 1.442695
    %v149 = vpow.pop %v148
    %v150 = vadd.f32 %v149, 1.0
    %v151 = vrcp.pop %v150
    %v152 = vmul.f32 1.0, %v151
    %v153 = vmul.f32 %v144, %v152
    %v154 = vld [vmem:[%s4] sm:$0xff]
    %v155 = vld [vmem:[%s4 + $0x8] sm:$0xff]
    %v156 = vld [vmem:[%s4 + $0x10] sm:$0xff]
    %v157 = vld [vmem:[%s4 + $0x18] sm:$0xff]
    %v158 = vld [vmem:[%s5] sm:$0x1]
    %v160 = vlaneseq
    %v161 = vshrl.u32 %v160, 7
    %v162 = vsub.s32 0, %v161
    %v163 = vrot.slane %v158, %v162
    %v166 = vsel %vm73, %v153, 0
    %168 = vmatprep.subr.mxu0 0.0
    %169 = vmatpush1.msra.mxu0 0.0
    %170 = vmatprep.subr.mxu0 0.0
    %171 = vmatpush1.msra.mxu0 0.0
    %172 = vmatprep.subr.mxu0 0.0
    %173 = vmatpush1.msra.mxu0 0.0
    %174 = vmatprep.subr.mxu0 0.0
    %175 = vmatpush1.msra.mxu0 0.0
    %176 = vmatprep.subr.mxu0 0.0
    %177 = vmatpush1.msra.mxu0 0.0
    %178 = vmatprep.subr.mxu0 0.0
    %179 = vmatpush1.msra.mxu0 0.0
    %180 = vmatprep.subr.mxu0 0.0
    %181 = vmatpush1.msra.mxu0 0.0
    %182 = vmatprep.subr.mxu0 0.0
    %183 = vmatpush1.msra.mxu0 0.0
    %184 = vmatprep.subr.mxu0 0.0
    %185 = vmatpush1.msra.mxu0 0.0
    %186 = vmatprep.subr.mxu0 0.0
    %187 = vmatpush1.msra.mxu0 0.0
    %188 = vmatprep.subr.mxu0 0.0
    %189 = vmatpush1.msra.mxu0 0.0
    %190 = vmatprep.subr.mxu0 0.0
    %191 = vmatpush1.msra.mxu0 0.0
    %192 = vmatprep.subr.mxu0 0.0
    %193 = vmatpush1.msra.mxu0 %v157
    %194 = vmatprep.subr.mxu0 0.0
    %195 = vmatpush1.msra.mxu0 %v156
    %196 = vmatprep.subr.mxu0 0.0
    %197 = vmatpush1.msra.mxu0 %v155
    %198 = vmatprep.subr.mxu0 0.0
    %199 = vmatpush1.msra.mxu0 %v154
    %200 = vmatprep.subr.mxu0 0.0
    %201 = vmatpush2.msra.mxu0 0.0
    %202 = vmatprep.subr.mxu0 0.0
    %203 = vmatpush2.msra.mxu0 0.0
    %204 = vmatprep.subr.mxu0 0.0
    %205 = vmatpush2.msra.mxu0 0.0
    %206 = vmatprep.subr.mxu0 0.0
    %207 = vmatpush2.msra.mxu0 0.0
    %208 = vmatprep.subr.mxu0 0.0
    %209 = vmatpush2.msra.mxu0 0.0
    %210 = vmatprep.subr.mxu0 0.0
    %211 = vmatpush2.msra.mxu0 0.0
    %212 = vmatprep.subr.mxu0 0.0
    %213 = vmatpush2.msra.mxu0 0.0
    %214 = vmatprep.subr.mxu0 0.0
    %215 = vmatpush2.msra.mxu0 0.0
    %216 = vmatprep.subr.mxu0 0.0
    %217 = vmatpush2.msra.mxu0 0.0
    %218 = vmatprep.subr.mxu0 0.0
    %219 = vmatpush2.msra.mxu0 0.0
    %220 = vmatprep.subr.mxu0 0.0
    %221 = vmatpush2.msra.mxu0 0.0
    %222 = vmatprep.subr.mxu0 0.0
    %223 = vmatpush2.msra.mxu0 0.0
    %224 = vmatprep.subr.mxu0 0.0
    %225 = vmatpush2.msra.mxu0 0.0
    %226 = vmatprep.subr.mxu0 0.0
    %227 = vmatpush2.msra.mxu0 0.0
    %228 = vmatprep.subr.mxu0 0.0
    %229 = vmatpush2.msra.mxu0 0.0
    %230 = vmatprep.subr.mxu0 0.0
    %231 = vmatpush2.msra.mxu0 0.0
    %232 = vmatprep.mubr.f32.mxu0 0.0
    %233 = vmatmul.mubr.f32.gmra.mxu0 %v166
    %v234 = vpop.f32.mrf.mxu0
    %v235 = vadd.f32 %v163, %v234
    %v236 = vpop.f32.mrf.mxu0
    %237 = vdwg.mxu0
    %238 = vst.msk [vmem:[#allocation5] sm:$0xff] %vm73, %v235
    // Predicated region
    $region22: #{tpu_custom_call.1} parent=1 // pred_check
      _
    $region23: #{tpu_custom_call.1} parent=1 // pred_check_branch
      %240 = sbr.rel (0) target = $region25
    $region24: #{tpu_custom_call.1} parent=1 // pred_region
      %s242 = ssub.s32 128, 128
      %243 = vsyncadd [#allocation6], %s242
      %s245 = sshll.u32 [#allocation5], 4
      %s246 = int_to_ptr.vmem [resolvable:$true] %s245
      %248 = dma.vmem_to_hbm [thread:$0]  %s246, 128, %s6, [#allocation6]
    $region25: #{tpu_custom_call.1} parent=1 // pred_fallthru
      _
    // Predicated region
    $region26: #{tpu_custom_call.1} parent=1 // pred_check
      _
    $region27: #{tpu_custom_call.1} parent=1 // pred_check_branch
      %250 = sbr.rel (0) target = $region29
    $region28: #{tpu_custom_call.1} parent=1 // pred_region
      %251 = dma.done [#allocation6], 128
    $region29: #{tpu_custom_call.1} parent=1 // pred_fallthru
      _
    %252 = vsyncpa [#allocation6], 1

</llo_original>
